<compile_context>
chip_gen: v5e
topology: v5e:2x2
jax: 0.10.0
libtpu: 0.0.40
codegen_flags: <defaults>
</compile_context>

<pallas_src>
import functools

import jax
import jax.numpy as jnp
from jax import lax
from jax.experimental import pallas as pl
from jax.experimental.pallas import tpu as pltpu


def _round_up(n, m):
    return ((n + m - 1) // m) * m


# ---------------------------------------------------------------------------
# Pallas kernel: 3-layer MLP head, batch-on-lanes compute, natural-layout input.
#   x_ref   : (tb, F)   natural layout batch tile (f32 or bf16 from HBM)
#   w1t_ref : (64, F)   first-layer weights, pretrain projection folded in
#   w2t_ref : (64, 64)
#   pack_ref: (64, 8) f32; cols: 0=b1, 1=b2, 2=alpha1, 3=alpha2, 4=w3, 5(row0)=b3
#   o_ref   : (1, tb)   lane-dense output tile
# ---------------------------------------------------------------------------
def head_kernel(x_ref, w1t_ref, w2t_ref, pack_ref, o_ref, *, lane_chunk):
    # Resident params, read once per grid step (static slices, hoisted out of
    # the chunk loop so nothing is re-broadcast per iteration).
    w1t = w1t_ref[...]                 # (64, F)  compute dtype
    w2t = w2t_ref[...]                 # (64, 64) compute dtype
    b1 = pack_ref[:, 0:1]              # (64, 1) f32
    b2 = pack_ref[:, 1:2]              # (64, 1) f32
    a1 = pack_ref[:, 2:3]              # (64, 1) f32  (PReLU slope, replicated)
    a2 = pack_ref[:, 3:4]              # (64, 1) f32
    w3c = pack_ref[:, 4:5]             # (64, 1) f32  (final 64->1 weights)
    b3 = pack_ref[0:1, 5:6]            # (1, 1)  f32

    tb = x_ref.shape[0]                # static block shape
    ch = min(lane_chunk, tb)           # lane-chunk width (multiple of 128)
    n_full = tb // ch
    rem = tb - n_full * ch             # multiple of 128 (tb, ch both are)

    def process(start, width):
        # (width, F) natural-layout rows; cast to MXU dtype on the VPU.
        xc = x_ref[pl.ds(start, width), :].astype(w1t.dtype)

        # Layer 1: contract F of both operands (NT dims, flash-attention style)
        # -> (64, width) f32 with the batch on the 128-lane axis.
        h = lax.dot_general(w1t, xc, (((1,), (1,)), ((), ())),
                            preferred_element_type=jnp.float32)
        h = h + b1
        h = jnp.maximum(h, 0.0) + a1 * jnp.minimum(h, 0.0)

        # Layer 2: Linear(64,64) + PReLU, f32 accumulate.
        h = jnp.dot(w2t, h.astype(w2t.dtype),
                    preferred_element_type=jnp.float32) + b2
        h = jnp.maximum(h, 0.0) + a2 * jnp.minimum(h, 0.0)

        # Layer 3 (64 -> 1): VPU multiply + XLU sublane reduce; keeps the MXU
        # free of sublane-sparse (1, width) result pops.
        out = jnp.sum(h * w3c, axis=0, keepdims=True) + b3    # (1, width) f32
        o_ref[:, pl.ds(start, width)] = out.astype(o_ref.dtype)

    # Inner lane-chunk loop keeps h1/h2 temporaries ~0.5 MiB regardless of tb.
    def body(i, carry):
        start = pl.multiple_of(i * ch, 128)
        process(start, ch)
        return carry

    lax.fori_loop(0, n_full, body, 0)
    if rem > 0:
        process(n_full * ch, rem)      # static tail chunk (multiple of 128)


def regression_head(x, head_params, *, block_b=32768, lane_chunk=2048,
                    compute_dtype=jnp.bfloat16):
    """x: (B, F). head_params: (w1, b1, a1, w2, b2, a2, w3, b3) with weights in
    (in_features, out_features) layout.  Returns (B, 1) f32.

    compute_dtype=jnp.float32 is a correctness-check path only (it roughly
    triples the binding MXU vmatmul count); bf16 is the production path.
    """
    w1, b1, a1, w2, b2, a2, w3, b3 = head_params
    B, F = x.shape
    H = w1.shape[1]                                    # 64

    # --- Tile selection -----------------------------------------------------
    # * lane-aligned (multiple of 128)
    # * at least 2 grid steps when possible so ("parallel",) can split the
    #   batch across v7x's two TensorCores
    # * tb derived from cdiv(B, n_tiles) so padding waste is < 128 per tile
    # * capped so the double-buffered (tb, F) input block stays <= ~8 MiB
    block_b = max(128, _round_up(block_b, 128))
    itemsize = jnp.dtype(x.dtype).itemsize
    vmem_cap = max(128, ((8 * 1024 * 1024) // (2 * F * itemsize)) // 128 * 128)
    block_b = min(block_b, vmem_cap)
    n_tiles = max(2, pl.cdiv(B, block_b))
    tb = _round_up(pl.cdiv(B, n_tiles), 128)
    grid = (pl.cdiv(B, tb),)

    # Tiny parameter tensors: transpose/cast in the wrapper (negligible bytes).
    w1t = w1.T.astype(compute_dtype)                   # (H, F)
    w2t = w2.T.astype(compute_dtype)                   # (H, H)

    # Consolidate the six tiny param tensors into one resident f32 VMEM pack.
    # TODO(synk): a1/a2 assume nn.PReLU() default num_parameters=1; per-channel
    # PReLU would need a per-row alpha column instead of a replicated scalar.
    pack = jnp.zeros((H, 8), jnp.float32)
    pack = pack.at[:, 0].set(b1.reshape(H))
    pack = pack.at[:, 1].set(b2.reshape(H))
    pack = pack.at[:, 2].set(jnp.full((H,), a1.reshape(()), jnp.float32))
    pack = pack.at[:, 3].set(jnp.full((H,), a2.reshape(()), jnp.float32))
    pack = pack.at[:, 4].set(w3.reshape(H))
    pack = pack.at[0, 5].set(b3.reshape(()))

    flops = 2 * B * (H * F + H * H + H)
    bytes_accessed = (B * F * itemsize + B * 4
                      + (H * F + H * H) * jnp.dtype(compute_dtype).itemsize
                      + H * 8 * 4)
    cost = pl.CostEstimate(flops=flops, transcendentals=0,
                           bytes_accessed=bytes_accessed)

    kernel = functools.partial(head_kernel, lane_chunk=lane_chunk)
    out = pl.pallas_call(
        kernel,
        out_shape=jax.ShapeDtypeStruct((1, B), jnp.float32),
        grid_spec=pltpu.PrefetchScalarGridSpec(
            num_scalar_prefetch=0,
            grid=grid,
            in_specs=[
                pl.BlockSpec((tb, F), lambda i: (i, 0)),   # natural batch tiles
                pl.BlockSpec((H, F), lambda i: (0, 0)),    # resident weights
                pl.BlockSpec((H, H), lambda i: (0, 0)),
                pl.BlockSpec((H, 8), lambda i: (0, 0)),
            ],
            out_specs=pl.BlockSpec((1, tb), lambda i: (0, i)),
        ),
        compiler_params=pltpu.CompilerParams(
            dimension_semantics=("parallel",),
            vmem_limit_bytes=32 * 1024 * 1024),
        cost_estimate=cost,
    )(x, w1t, w2t, pack)

    return out.reshape(B, 1)


# ---------------------------------------------------------------------------
# Pretrain backbone handling.
# TODO(synk): init_pretrain_siamese_model() is not defined in the snippet; a
# deterministic *linear* projection to 10 features stands in, so it can be
# folded algebraically into the first head layer.  If the real (nonlinear)
# backbone is substituted, revert the fold and compute the embedding in-kernel
# (or in a preceding kernel) instead.
# ---------------------------------------------------------------------------
def fold_pretrain_into_head(pre_params, head_params):
    w_pre, b_pre = pre_params                    # (F,10), (1,10)
    w1, b1, a1, w2, b2, a2, w3, b3 = head_params
    hp = jax.lax.Precision.HIGHEST
    w1f = jnp.dot(w_pre, w1, precision=hp)       # (F, 64)
    b1f = jnp.dot(b_pre, w1, precision=hp) + b1  # (1, 64)
    return (w1f, b1f, a1, w2, b2, a2, w3, b3)


def shap_regression_forward(x, pre_params, head_params, **kw):
    """Full module forward: folded pretrain stand-in + Pallas regression head."""
    folded = fold_pretrain_into_head(pre_params, head_params)
    return regression_head(x, folded, **kw)


# ---------------------------------------------------------------------------
# Parameter construction (deterministic, matching the module's shapes).
# ---------------------------------------------------------------------------
def init_params(key, in_features):
    keys = jax.random.split(key, 8)
    scale = 0.1
    w_pre = scale * jax.random.normal(keys[0], (in_features, 10), jnp.float32)
    b_pre = scale * jax.random.normal(keys[1], (1, 10), jnp.float32)

    w1 = scale * jax.random.normal(keys[2], (10, 64), jnp.float32)
    b1 = scale * jax.random.normal(keys[3], (1, 64), jnp.float32)
    a1 = jnp.full((1,), 0.25, jnp.float32)       # nn.PReLU() default init
    w2 = scale * jax.random.normal(keys[4], (64, 64), jnp.float32)
    b2 = scale * jax.random.normal(keys[5], (1, 64), jnp.float32)
    a2 = jnp.full((1,), 0.25, jnp.float32)
    w3 = scale * jax.random.normal(keys[6], (64, 1), jnp.float32)
    b3 = scale * jax.random.normal(keys[7], (1, 1), jnp.float32)

    pre = (w_pre, b_pre)
    head = (w1, b1, a1, w2, b2, a2, w3, b3)
    return pre, head


# ---------------------------------------------------------------------------
# Pure-JAX reference (f32, unfused) for correctness.
# ---------------------------------------------------------------------------
def reference_forward(x, pre_params, head_params):
    w_pre, b_pre = pre_params
    w1, b1, a1, w2, b2, a2, w3, b3 = head_params
    hp = jax.lax.Precision.HIGHEST

    def prelu(h, a):
        return jnp.maximum(h, 0.0) + a[0] * jnp.minimum(h, 0.0)

    emb = jnp.dot(x, w_pre, precision=hp) + b_pre
    h = prelu(jnp.dot(emb, w1, precision=hp) + b1, a1)
    h = prelu(jnp.dot(h, w2, precision=hp) + b2, a2)
    return jnp.dot(h, w3, precision=hp) + b3


if __name__ == "__main__":
    key = jax.random.PRNGKey(0)
    k_x, k_p = jax.random.split(key)

    batch, in_features = 8, 32
    x = jax.random.normal(k_x, (batch, in_features), jnp.float32)
    pre_params, head_params = init_params(k_p, in_features)

    ref = reference_forward(x, pre_params, head_params)

    # f32 path: correctness check ONLY (never a benchmark path -- ~3x MXU work).
    out_f32 = shap_regression_forward(
        x, pre_params, head_params, compute_dtype=jnp.float32)
    out_f32 = jax.block_until_ready(out_f32)
    assert out_f32.shape == (batch, 1)
    assert jnp.allclose(out_f32, ref, atol=2e-3, rtol=2e-3)

    # bf16 path: production path on v5e/v6e/v7x.
    out_bf16 = shap_regression_forward(
        x, pre_params, head_params, compute_dtype=jnp.bfloat16)
    out_bf16 = jax.block_until_ready(out_bf16)
    assert out_bf16.shape == (batch, 1)
    assert jnp.allclose(out_bf16, ref, atol=3e-2, rtol=3e-2)

    print("KERNEL_OK")
</pallas_src>

<mosaic_0001>
module attributes {stable_mosaic.version = 11 : i64} {
  func.func @head_kernel(%arg0: i32, %arg1: memref<128x32xf32, #tpu.memory_space<vmem>>, %arg2: memref<64x32xf32, #tpu.memory_space<vmem>>, %arg3: memref<64x64xf32, #tpu.memory_space<vmem>>, %arg4: memref<64x8xf32, #tpu.memory_space<vmem>>, %arg5: memref<1x128xf32, #tpu.memory_space<vmem>>) attributes {dimension_semantics = [#tpu.dimension_semantics<parallel>], iteration_bounds = array<i64: 1>, scalar_prefetch = 0 : i64, scratch_operands = 0 : i64, tpu.core_type = #tpu.core_type<tc>, window_params = [{transform_indices = @transform_0, window_bounds = array<i64: 128, 32>}, {pipeline_mode = #tpu.pipeline_mode<synchronous>, transform_indices = @transform_1, window_bounds = array<i64: 64, 32>}, {pipeline_mode = #tpu.pipeline_mode<synchronous>, transform_indices = @transform_2, window_bounds = array<i64: 64, 64>}, {pipeline_mode = #tpu.pipeline_mode<synchronous>, transform_indices = @transform_3, window_bounds = array<i64: 64, 8>}, {transform_indices = @transform_4, window_bounds = array<i64: 1, 128>}]} {
    %c0 = arith.constant 0 : index
    %c0_0 = arith.constant 0 : index
    %0 = vector.load %arg2[%c0, %c0_0] : memref<64x32xf32, #tpu.memory_space<vmem>>, vector<64x32xf32>
    %c0_1 = arith.constant 0 : index
    %c0_2 = arith.constant 0 : index
    %1 = vector.load %arg3[%c0_1, %c0_2] : memref<64x64xf32, #tpu.memory_space<vmem>>, vector<64x64xf32>
    %c0_3 = arith.constant 0 : index
    %c0_4 = arith.constant 0 : index
    %2 = vector.load %arg4[%c0_3, %c0_4] : memref<64x8xf32, #tpu.memory_space<vmem>>, vector<64x1xf32>
    %c0_5 = arith.constant 0 : index
    %c1 = arith.constant 1 : index
    %3 = vector.load %arg4[%c0_5, %c1] : memref<64x8xf32, #tpu.memory_space<vmem>>, vector<64x1xf32>
    %c0_6 = arith.constant 0 : index
    %c2 = arith.constant 2 : index
    %4 = vector.load %arg4[%c0_6, %c2] : memref<64x8xf32, #tpu.memory_space<vmem>>, vector<64x1xf32>
    %c0_7 = arith.constant 0 : index
    %c3 = arith.constant 3 : index
    %5 = vector.load %arg4[%c0_7, %c3] : memref<64x8xf32, #tpu.memory_space<vmem>>, vector<64x1xf32>
    %c0_8 = arith.constant 0 : index
    %c4 = arith.constant 4 : index
    %6 = vector.load %arg4[%c0_8, %c4] : memref<64x8xf32, #tpu.memory_space<vmem>>, vector<64x1xf32>
    %c0_9 = arith.constant 0 : index
    %c5 = arith.constant 5 : index
    %7 = vector.load %arg4[%c0_9, %c5] : memref<64x8xf32, #tpu.memory_space<vmem>>, vector<1x1xf32>
    %c0_i32 = arith.constant 0 : i32
    %c128_i32 = arith.constant 128 : i32
    %8 = arith.muli %c0_i32, %c128_i32 : i32
    %9 = tpu.assume_multiple %8, 128 : i32
    %10 = arith.index_cast %9 : i32 to index
    %c0_10 = arith.constant 0 : index
    %11 = vector.load %arg1[%10, %c0_10] : memref<128x32xf32, #tpu.memory_space<vmem>>, vector<128x32xf32>
    %cst = arith.constant dense<0.000000e+00> : vector<64x128xf32>
    %12 = tpu.matmul %0, %11, %cst {dimension_numbers = #tpu.dot_dimension_numbers<[1], [1], [0], [0], [0, 0, 1, 0], [], []>} : vector<64x32xf32>, vector<128x32xf32>, vector<64x128xf32> -> vector<64x128xf32>
    %13 = vector.broadcast %2 : vector<64x1xf32> to vector<64x128xf32>
    %14 = arith.addf %12, %13 : vector<64x128xf32>
    %cst_11 = arith.constant 0.000000e+00 : f32
    %15 = vector.broadcast %cst_11 : f32 to vector<64x128xf32>
    %16 = arith.maximumf %14, %15 : vector<64x128xf32>
    %cst_12 = arith.constant 0.000000e+00 : f32
    %17 = vector.broadcast %cst_12 : f32 to vector<64x128xf32>
    %18 = arith.minimumf %14, %17 : vector<64x128xf32>
    %19 = vector.broadcast %4 : vector<64x1xf32> to vector<64x128xf32>
    %20 = arith.mulf %19, %18 : vector<64x128xf32>
    %21 = arith.addf %16, %20 : vector<64x128xf32>
    %cst_13 = arith.constant dense<0.000000e+00> : vector<64x128xf32>
    %22 = tpu.matmul %1, %21, %cst_13 {dimension_numbers = #tpu.dot_dimension_numbers<[1], [0], [0], [1], [0, 0, 1, 1], [], []>} : vector<64x64xf32>, vector<64x128xf32>, vector<64x128xf32> -> vector<64x128xf32>
    %23 = vector.broadcast %3 : vector<64x1xf32> to vector<64x128xf32>
    %24 = arith.addf %22, %23 : vector<64x128xf32>
    %cst_14 = arith.constant 0.000000e+00 : f32
    %25 = vector.broadcast %cst_14 : f32 to vector<64x128xf32>
    %26 = arith.maximumf %24, %25 : vector<64x128xf32>
    %cst_15 = arith.constant 0.000000e+00 : f32
    %27 = vector.broadcast %cst_15 : f32 to vector<64x128xf32>
    %28 = arith.minimumf %24, %27 : vector<64x128xf32>
    %29 = vector.broadcast %5 : vector<64x1xf32> to vector<64x128xf32>
    %30 = arith.mulf %29, %28 : vector<64x128xf32>
    %31 = arith.addf %26, %30 : vector<64x128xf32>
    %32 = vector.broadcast %6 : vector<64x1xf32> to vector<64x128xf32>
    %33 = arith.mulf %31, %32 : vector<64x128xf32>
    %cst_16 = arith.constant dense<0.000000e+00> : vector<128xf32>
    %34 = vector.multi_reduction <add>, %33, %cst_16 [0] : vector<64x128xf32> to vector<128xf32>
    %35 = vector.shape_cast %34 : vector<128xf32> to vector<1x128xf32>
    %36 = vector.broadcast %7 : vector<1x1xf32> to vector<1x128xf32>
    %37 = arith.addf %35, %36 : vector<1x128xf32>
    %c0_17 = arith.constant 0 : index
    %38 = arith.index_cast %9 : i32 to index
    %39 = vector.load %arg5[%c0_17, %38] : memref<1x128xf32, #tpu.memory_space<vmem>>, vector<1x128xf32>
    tpu.vector_store %arg5[%c0_17, %38], %37 {strides = array<i32>} : memref<1x128xf32, #tpu.memory_space<vmem>>, vector<1x128xf32>,
    %c1_i32 = arith.constant 1 : i32
    return
  }
  func.func @transform_0(%arg0: i32) -> (i32, i32) {
    %c0_i32 = arith.constant 0 : i32
    %c0_i32_0 = arith.constant 0 : i32
    return %arg0, %c0_i32 : i32, i32
  }
  func.func @transform_1(%arg0: i32) -> (i32, i32) {
    %c0_i32 = arith.constant 0 : i32
    %c0_i32_0 = arith.constant 0 : i32
    %c0_i32_1 = arith.constant 0 : i32
    return %c0_i32, %c0_i32_0 : i32, i32
  }
  func.func @transform_2(%arg0: i32) -> (i32, i32) {
    %c0_i32 = arith.constant 0 : i32
    %c0_i32_0 = arith.constant 0 : i32
    %c0_i32_1 = arith.constant 0 : i32
    return %c0_i32, %c0_i32_0 : i32, i32
  }
  func.func @transform_3(%arg0: i32) -> (i32, i32) {
    %c0_i32 = arith.constant 0 : i32
    %c0_i32_0 = arith.constant 0 : i32
    %c0_i32_1 = arith.constant 0 : i32
    return %c0_i32, %c0_i32_0 : i32, i32
  }
  func.func @transform_4(%arg0: i32) -> (i32, i32) {
    %c0_i32 = arith.constant 0 : i32
    %c0_i32_0 = arith.constant 0 : i32
    return %c0_i32, %arg0 : i32, i32
  }
}

</mosaic_0001>

<llo_original>
// kernel: tpu_custom_call.1
$region0: #{tpu_custom_call.1}
  #allocation0 [shape = 'u32[]', space=smem, size = 0x4, offset = 0x4, fixed_abs, tag = 'smem constant byte address 0x4 - core index']
  #allocation1 [shape = 'u32[72,128]{1,0:T(1,128)}', space=vmem, size = 0x9000, scoped, tag = 'internal scratch']
  %s0 = inlined_call_operand.vmem [shape: f32[8,32], index: 0, kind: input, shape index: {}]
  %s1 = inlined_call_operand.vmem [shape: f32[64,32], index: 1, kind: input, shape index: {}]
  %s2 = inlined_call_operand.vmem [shape: f32[64,64], index: 2, kind: input, shape index: {}]
  %s3 = inlined_call_operand.vmem [shape: f32[64,8], index: 3, kind: input, shape index: {}]
  %s4 = inlined_call_operand.hbm [shape: f32[1,8], index: 4, kind: output, shape index: {}]
  %s5 = sld [smem:[#allocation0]]
  $region26: #{tpu_custom_call.1} parent=0
    _
  %s7 = ssub.s32 1, %s5
  %s8 = scalar_select 0, %s7, %s5
  $region1: #{tpu_custom_call.1} parent=0
    #allocation2 [shape = 'u8[512]{0}', space=vmem, size = 0x400, scoped, tag = 'output window, operand 0, single buffered']
    #allocation3 [shape = 's32[1]{0}', space=sflag, size = 0x4, scoped, tag = 'scoped memory for tpu_custom_call.1']
    %9 = vsyncpa [#allocation3], 0
    // Predicated region
    $region2: #{tpu_custom_call.1} parent=1 // pred_check
      _
    $region3: #{tpu_custom_call.1} parent=1 // pred_check_branch
      %11 = sbr.rel (0) target = $region5
    $region4: #{tpu_custom_call.1} parent=1 // pred_region
      _
    $region5: #{tpu_custom_call.1} parent=1 // pred_fallthru
      _
    // Predicated region
    $region6: #{tpu_custom_call.1} parent=1 // pred_check
      _
    $region7: #{tpu_custom_call.1} parent=1 // pred_check_branch
      %13 = sbr.rel (0) target = $region9
    $region8: #{tpu_custom_call.1} parent=1 // pred_region
      _
    $region9: #{tpu_custom_call.1} parent=1 // pred_fallthru
      _
    // Predicated region
    $region10: #{tpu_custom_call.1} parent=1 // pred_check
      _
    $region11: #{tpu_custom_call.1} parent=1 // pred_check_branch
      %15 = sbr.rel (0) target = $region13
    $region12: #{tpu_custom_call.1} parent=1 // pred_region
      _
    $region13: #{tpu_custom_call.1} parent=1 // pred_fallthru
      _
    // Predicated region
    $region14: #{tpu_custom_call.1} parent=1 // pred_check
      _
    $region15: #{tpu_custom_call.1} parent=1 // pred_check_branch
      %17 = sbr.rel (0) target = $region17
    $region16: #{tpu_custom_call.1} parent=1 // pred_region
      _
    $region17: #{tpu_custom_call.1} parent=1 // pred_fallthru
      _
    %v18 = vld [vmem:[%s1] sm:$0xff]
    %v19 = vld [vmem:[%s1 + $0x8] sm:$0xff]
    %v20 = vld [vmem:[%s1 + $0x10] sm:$0xff]
    %v21 = vld [vmem:[%s1 + $0x18] sm:$0xff]
    %v22 = vld [vmem:[%s1 + $0x20] sm:$0xff]
    %v23 = vld [vmem:[%s1 + $0x28] sm:$0xff]
    %v24 = vld [vmem:[%s1 + $0x30] sm:$0xff]
    %v25 = vld [vmem:[%s1 + $0x38] sm:$0xff]
    %v26 = vld [vmem:[%s2] sm:$0xff]
    %v27 = vld [vmem:[%s2 + $0x8] sm:$0xff]
    %v28 = vld [vmem:[%s2 + $0x10] sm:$0xff]
    %v29 = vld [vmem:[%s2 + $0x18] sm:$0xff]
    %v30 = vld [vmem:[%s2 + $0x20] sm:$0xff]
    %v31 = vld [vmem:[%s2 + $0x28] sm:$0xff]
    %v32 = vld [vmem:[%s2 + $0x30] sm:$0xff]
    %v33 = vld [vmem:[%s2 + $0x38] sm:$0xff]
    %v34 = vld [vmem:[%s3] sm:$0xff]
    %v35 = vld [vmem:[%s3 + $0x8] sm:$0xff]
    %v36 = vld [vmem:[%s3 + $0x10] sm:$0xff]
    %v37 = vld [vmem:[%s3 + $0x18] sm:$0xff]
    %v38 = vld [vmem:[%s3 + $0x20] sm:$0xff]
    %v39 = vld [vmem:[%s3 + $0x28] sm:$0xff]
    %v40 = vld [vmem:[%s3 + $0x30] sm:$0xff]
    %v41 = vld [vmem:[%s3 + $0x38] sm:$0xff]
    %v42 = vld [vmem:[%s3] sm:$0x1]
    %v43 = vld [vmem:[%s0] sm:$0xff]
    %v44 = vld [vmem:[%s0 + $0x8] sm:$0xff]
    %v45 = vld [vmem:[%s0 + $0x10] sm:$0xff]
    %v46 = vld [vmem:[%s0 + $0x18] sm:$0xff]
    %v47 = vld [vmem:[%s0 + $0x20] sm:$0xff]
    %v48 = vld [vmem:[%s0 + $0x28] sm:$0xff]
    %v49 = vld [vmem:[%s0 + $0x30] sm:$0xff]
    %v50 = vld [vmem:[%s0 + $0x38] sm:$0xff]
    %v51 = vld [vmem:[%s0 + $0x40] sm:$0xff]
    %v52 = vld [vmem:[%s0 + $0x48] sm:$0xff]
    %v53 = vld [vmem:[%s0 + $0x50] sm:$0xff]
    %v54 = vld [vmem:[%s0 + $0x58] sm:$0xff]
    %v55 = vld [vmem:[%s0 + $0x60] sm:$0xff]
    %v56 = vld [vmem:[%s0 + $0x68] sm:$0xff]
    %v57 = vld [vmem:[%s0 + $0x70] sm:$0xff]
    %v58 = vld [vmem:[%s0 + $0x78] sm:$0xff]
    %60 = vset.pattern.permute.xlu0 0
    %61 = vperm.xlu0 %60, %v34
    %v62 = vpop.permute.xlu0 %61
    %65 = vset.pattern.permute.xlu0 0
    %66 = vperm.xlu0 %65, %v35
    %v67 = vpop.permute.xlu0 %66
    %70 = vset.pattern.permute.xlu0 0
    %71 = vperm.xlu0 %70, %v36
    %v72 = vpop.permute.xlu0 %71
    %75 = vset.pattern.permute.xlu0 0
    %76 = vperm.xlu0 %75, %v37
    %v77 = vpop.permute.xlu0 %76
    %80 = vset.pattern.permute.xlu0 0
    %81 = vperm.xlu0 %80, %v38
    %v82 = vpop.permute.xlu0 %81
    %85 = vset.pattern.permute.xlu0 0
    %86 = vperm.xlu0 %85, %v39
    %v87 = vpop.permute.xlu0 %86
    %90 = vset.pattern.permute.xlu0 0
    %91 = vperm.xlu0 %90, %v40
    %v92 = vpop.permute.xlu0 %91
    %95 = vset.pattern.permute.xlu0 0
    %96 = vperm.xlu0 %95, %v41
    %v97 = vpop.permute.xlu0 %96
    %vm99 = vcmask 261120
    %v101 = vsel %vm99, %v18, 0
    %v104 = vsel %vm99, %v19, 0
    %v107 = vsel %vm99, %v20, 0
    %v110 = vsel %vm99, %v21, 0
    %v113 = vsel %vm99, %v22, 0
    %v116 = vsel %vm99, %v23, 0
    %v119 = vsel %vm99, %v24, 0
    %v122 = vsel %vm99, %v25, 0
    %v125 = vsel %vm99, %v43, 0
    %v128 = vsel %vm99, %v44, 0
    %v131 = vsel %vm99, %v45, 0
    %v134 = vsel %vm99, %v46, 0
    %v137 = vsel %vm99, %v47, 0
    %v140 = vsel %vm99, %v48, 0
    %v143 = vsel %vm99, %v49, 0
    %v146 = vsel %vm99, %v50, 0
    %v149 = vsel %vm99, %v51, 0
    %v152 = vsel %vm99, %v52, 0
    %v155 = vsel %vm99, %v53, 0
    %v158 = vsel %vm99, %v54, 0
    %v161 = vsel %vm99, %v55, 0
    %v164 = vsel %vm99, %v56, 0
    %v167 = vsel %vm99, %v57, 0
    %v170 = vsel %vm99, %v58, 0
    %172 = vmatpush.xpose.msra.mxu0 %v170
    %173 = vmatpush.xpose.msra.mxu0 %v167
    %174 = vmatpush.xpose.msra.mxu0 %v164
    %175 = vmatpush.xpose.msra.mxu0 %v161
    %176 = vmatpush.xpose.msra.mxu0 %v158
    %177 = vmatpush.xpose.msra.mxu0 %v155
    %178 = vmatpush.xpose.msra.mxu0 %v152
    %179 = vmatpush.xpose.msra.mxu0 %v149
    %180 = vmatpush.xpose.msra.mxu0 %v146
    %181 = vmatpush.xpose.msra.mxu0 %v143
    %182 = vmatpush.xpose.msra.mxu0 %v140
    %183 = vmatpush.xpose.msra.mxu0 %v137
    %184 = vmatpush.xpose.msra.mxu0 %v134
    %185 = vmatpush.xpose.msra.mxu0 %v131
    %186 = vmatpush.xpose.msra.mxu0 %v128
    %187 = vmatpush.xpose.msra.mxu0 %v125
    %188 = vmatmul.f32.gmra.mxu0 %v101
    %v189 = vpop.f32.mrf.mxu0
    %v190 = vadd.f32 %v62, %v189
    %191 = vmatmul.f32.gmra.mxu0 %v104
    %v192 = vpop.f32.mrf.mxu0
    %v193 = vadd.f32 %v67, %v192
    %194 = vmatmul.f32.gmra.mxu0 %v107
    %v195 = vpop.f32.mrf.mxu0
    %v196 = vadd.f32 %v72, %v195
    %197 = vmatmul.f32.gmra.mxu0 %v110
    %v198 = vpop.f32.mrf.mxu0
    %v199 = vadd.f32 %v77, %v198
    %200 = vmatmul.f32.gmra.mxu0 %v113
    %v201 = vpop.f32.mrf.mxu0
    %v202 = vadd.f32 %v82, %v201
    %203 = vmatmul.f32.gmra.mxu0 %v116
    %v204 = vpop.f32.mrf.mxu0
    %v205 = vadd.f32 %v87, %v204
    %206 = vmatmul.f32.gmra.mxu0 %v119
    %v207 = vpop.f32.mrf.mxu0
    %v208 = vadd.f32 %v92, %v207
    %209 = vmatmul.f32.gmra.mxu0 %v122
    %v210 = vpop.f32.mrf.mxu0
    %v211 = vadd.f32 %v97, %v210
    %212 = vdwg.mxu0
    %v213 = vmax.f32 %v190, 0.0
    %v214 = vmax.f32 %v193, 0.0
    %v215 = vmax.f32 %v196, 0.0
    %v216 = vmax.f32 %v199, 0.0
    %v217 = vmax.f32 %v202, 0.0
    %v218 = vmax.f32 %v205, 0.0
    %v219 = vmax.f32 %v208, 0.0
    %v220 = vmax.f32 %v211, 0.0
    %v221 = vmin.f32 %v190, 0.0
    %v222 = vmin.f32 %v193, 0.0
    %v223 = vmin.f32 %v196, 0.0
    %v224 = vmin.f32 %v199, 0.0
    %v225 = vmin.f32 %v202, 0.0
    %v226 = vmin.f32 %v205, 0.0
    %v227 = vmin.f32 %v208, 0.0
    %v228 = vmin.f32 %v211, 0.0
    %229 = vset.pattern.permute.xlu0 2
    %230 = vperm.xlu0 %229, %v34
    %v231 = vpop.permute.xlu0 %230
    %233 = vset.pattern.permute.xlu0 2
    %234 = vperm.xlu0 %233, %v35
    %v235 = vpop.permute.xlu0 %234
    %237 = vset.pattern.permute.xlu0 2
    %238 = vperm.xlu0 %237, %v36
    %v239 = vpop.permute.xlu0 %238
    %241 = vset.pattern.permute.xlu0 2
    %242 = vperm.xlu0 %241, %v37
    %v243 = vpop.permute.xlu0 %242
    %245 = vset.pattern.permute.xlu0 2
    %246 = vperm.xlu0 %245, %v38
    %v247 = vpop.permute.xlu0 %246
    %249 = vset.pattern.permute.xlu0 2
    %250 = vperm.xlu0 %249, %v39
    %v251 = vpop.permute.xlu0 %250
    %253 = vset.pattern.permute.xlu0 2
    %254 = vperm.xlu0 %253, %v40
    %v255 = vpop.permute.xlu0 %254
    %257 = vset.pattern.permute.xlu0 2
    %258 = vperm.xlu0 %257, %v41
    %v259 = vpop.permute.xlu0 %258
    %v261 = vmul.f32 %v231, %v221
    %v262 = vmul.f32 %v235, %v222
    %v263 = vmul.f32 %v239, %v223
    %v264 = vmul.f32 %v243, %v224
    %v265 = vmul.f32 %v247, %v225
    %v266 = vmul.f32 %v251, %v226
    %v267 = vmul.f32 %v255, %v227
    %v268 = vmul.f32 %v259, %v228
    %v269 = vadd.f32 %v213, %v261
    %v270 = vadd.f32 %v214, %v262
    %v271 = vadd.f32 %v215, %v263
    %v272 = vadd.f32 %v216, %v264
    %v273 = vadd.f32 %v217, %v265
    %v274 = vadd.f32 %v218, %v266
    %v275 = vadd.f32 %v219, %v267
    %v276 = vadd.f32 %v220, %v268
    %277 = vset.pattern.permute.xlu0 1
    %278 = vperm.xlu0 %277, %v34
    %v279 = vpop.permute.xlu0 %278
    %281 = vset.pattern.permute.xlu0 1
    %282 = vperm.xlu0 %281, %v35
    %v283 = vpop.permute.xlu0 %282
    %285 = vset.pattern.permute.xlu0 1
    %286 = vperm.xlu0 %285, %v36
    %v287 = vpop.permute.xlu0 %286
    %289 = vset.pattern.permute.xlu0 1
    %290 = vperm.xlu0 %289, %v37
    %v291 = vpop.permute.xlu0 %290
    %293 = vset.pattern.permute.xlu0 1
    %294 = vperm.xlu0 %293, %v38
    %v295 = vpop.permute.xlu0 %294
    %297 = vset.pattern.permute.xlu0 1
    %298 = vperm.xlu0 %297, %v39
    %v299 = vpop.permute.xlu0 %298
    %301 = vset.pattern.permute.xlu0 1
    %302 = vperm.xlu0 %301, %v40
    %v303 = vpop.permute.xlu0 %302
    %305 = vset.pattern.permute.xlu0 1
    %306 = vperm.xlu0 %305, %v41
    %v307 = vpop.permute.xlu0 %306
    %vm309 = vcmask 523264
    %v311 = vsel %vm309, %v26, 0
    %v314 = vsel %vm309, %v27, 0
    %v317 = vsel %vm309, %v28, 0
    %v320 = vsel %vm309, %v29, 0
    %v323 = vsel %vm309, %v30, 0
    %v326 = vsel %vm309, %v31, 0
    %v329 = vsel %vm309, %v32, 0
    %v332 = vsel %vm309, %v33, 0
    %334 = vmatpush.msra.mxu0 0.0
    %335 = vmatpush.msra.mxu0 0.0
    %336 = vmatpush.msra.mxu0 0.0
    %337 = vmatpush.msra.mxu0 0.0
    %338 = vmatpush.msra.mxu0 0.0
    %339 = vmatpush.msra.mxu0 0.0
    %340 = vmatpush.msra.mxu0 0.0
    %341 = vmatpush.msra.mxu0 0.0
    %342 = vmatpush.msra.mxu0 %v276
    %343 = vmatpush.msra.mxu0 %v275
    %344 = vmatpush.msra.mxu0 %v274
    %345 = vmatpush.msra.mxu0 %v273
    %346 = vmatpush.msra.mxu0 %v272
    %347 = vmatpush.msra.mxu0 %v271
    %348 = vmatpush.msra.mxu0 %v270
    %349 = vmatpush.msra.mxu0 %v269
    %350 = vmatmul.f32.gmra.mxu0 %v311
    %v351 = vpop.f32.mrf.mxu0
    %v352 = vadd.f32 %v279, %v351
    %353 = vmatmul.f32.gmra.mxu0 %v314
    %v354 = vpop.f32.mrf.mxu0
    %v355 = vadd.f32 %v283, %v354
    %356 = vmatmul.f32.gmra.mxu0 %v317
    %v357 = vpop.f32.mrf.mxu0
    %v358 = vadd.f32 %v287, %v357
    %359 = vmatmul.f32.gmra.mxu0 %v320
    %v360 = vpop.f32.mrf.mxu0
    %v361 = vadd.f32 %v291, %v360
    %362 = vmatmul.f32.gmra.mxu0 %v323
    %v363 = vpop.f32.mrf.mxu0
    %v364 = vadd.f32 %v295, %v363
    %365 = vmatmul.f32.gmra.mxu0 %v326
    %v366 = vpop.f32.mrf.mxu0
    %v367 = vadd.f32 %v299, %v366
    %368 = vmatmul.f32.gmra.mxu0 %v329
    %v369 = vpop.f32.mrf.mxu0
    %v370 = vadd.f32 %v303, %v369
    %371 = vmatmul.f32.gmra.mxu0 %v332
    %v372 = vpop.f32.mrf.mxu0
    %v373 = vadd.f32 %v307, %v372
    %374 = vdwg.mxu0
    %v375 = vmax.f32 %v352, 0.0
    %v376 = vmax.f32 %v355, 0.0
    %v377 = vmax.f32 %v358, 0.0
    %v378 = vmax.f32 %v361, 0.0
    %v379 = vmax.f32 %v364, 0.0
    %v380 = vmax.f32 %v367, 0.0
    %v381 = vmax.f32 %v370, 0.0
    %v382 = vmax.f32 %v373, 0.0
    %v383 = vmin.f32 %v352, 0.0
    %v384 = vmin.f32 %v355, 0.0
    %v385 = vmin.f32 %v358, 0.0
    %v386 = vmin.f32 %v361, 0.0
    %v387 = vmin.f32 %v364, 0.0
    %v388 = vmin.f32 %v367, 0.0
    %v389 = vmin.f32 %v370, 0.0
    %v390 = vmin.f32 %v373, 0.0
    %391 = vset.pattern.permute.xlu0 3
    %392 = vperm.xlu0 %391, %v34
    %v393 = vpop.permute.xlu0 %392
    %395 = vset.pattern.permute.xlu0 3
    %396 = vperm.xlu0 %395, %v35
    %v397 = vpop.permute.xlu0 %396
    %399 = vset.pattern.permute.xlu0 3
    %400 = vperm.xlu0 %399, %v36
    %v401 = vpop.permute.xlu0 %400
    %403 = vset.pattern.permute.xlu0 3
    %404 = vperm.xlu0 %403, %v37
    %v405 = vpop.permute.xlu0 %404
    %407 = vset.pattern.permute.xlu0 3
    %408 = vperm.xlu0 %407, %v38
    %v409 = vpop.permute.xlu0 %408
    %411 = vset.pattern.permute.xlu0 3
    %412 = vperm.xlu0 %411, %v39
    %v413 = vpop.permute.xlu0 %412
    %415 = vset.pattern.permute.xlu0 3
    %416 = vperm.xlu0 %415, %v40
    %v417 = vpop.permute.xlu0 %416
    %419 = vset.pattern.permute.xlu0 3
    %420 = vperm.xlu0 %419, %v41
    %v421 = vpop.permute.xlu0 %420
    %v423 = vmul.f32 %v393, %v383
    %v424 = vmul.f32 %v397, %v384
    %v425 = vmul.f32 %v401, %v385
    %v426 = vmul.f32 %v405, %v386
    %v427 = vmul.f32 %v409, %v387
    %v428 = vmul.f32 %v413, %v388
    %v429 = vmul.f32 %v417, %v389
    %v430 = vmul.f32 %v421, %v390
    %v431 = vadd.f32 %v375, %v423
    %v432 = vadd.f32 %v376, %v424
    %v433 = vadd.f32 %v377, %v425
    %v434 = vadd.f32 %v378, %v426
    %v435 = vadd.f32 %v379, %v427
    %v436 = vadd.f32 %v380, %v428
    %v437 = vadd.f32 %v381, %v429
    %v438 = vadd.f32 %v382, %v430
    %439 = vset.pattern.permute.xlu0 4
    %440 = vperm.xlu0 %439, %v34
    %v441 = vpop.permute.xlu0 %440
    %443 = vset.pattern.permute.xlu0 4
    %444 = vperm.xlu0 %443, %v35
    %v445 = vpop.permute.xlu0 %444
    %447 = vset.pattern.permute.xlu0 4
    %448 = vperm.xlu0 %447, %v36
    %v449 = vpop.permute.xlu0 %448
    %451 = vset.pattern.permute.xlu0 4
    %452 = vperm.xlu0 %451, %v37
    %v453 = vpop.permute.xlu0 %452
    %455 = vset.pattern.permute.xlu0 4
    %456 = vperm.xlu0 %455, %v38
    %v457 = vpop.permute.xlu0 %456
    %459 = vset.pattern.permute.xlu0 4
    %460 = vperm.xlu0 %459, %v39
    %v461 = vpop.permute.xlu0 %460
    %463 = vset.pattern.permute.xlu0 4
    %464 = vperm.xlu0 %463, %v40
    %v465 = vpop.permute.xlu0 %464
    %467 = vset.pattern.permute.xlu0 4
    %468 = vperm.xlu0 %467, %v41
    %v469 = vpop.permute.xlu0 %468
    %v471 = vmul.f32 %v431, %v441
    %v472 = vmul.f32 %v432, %v445
    %v473 = vmul.f32 %v433, %v449
    %v474 = vmul.f32 %v434, %v453
    %v475 = vmul.f32 %v435, %v457
    %v476 = vmul.f32 %v436, %v461
    %v477 = vmul.f32 %v437, %v465
    %v478 = vmul.f32 %v438, %v469
    %v479 = vadd.f32 %v471, %v472
    %v480 = vadd.f32 %v479, %v473
    %v481 = vadd.f32 %v480, %v474
    %v482 = vadd.f32 %v481, %v475
    %v483 = vadd.f32 %v482, %v476
    %v484 = vadd.f32 %v483, %v477
    %v485 = vadd.f32 %v484, %v478
    %v486 = vrot.slane %v485, 4
    %v487 = vadd.f32 %v485, %v486
    %v488 = vrot.slane %v487, 2
    %v489 = vadd.f32 %v487, %v488
    %v490 = vrot.slane %v489, 1
    %v491 = vadd.f32 %v489, %v490
    %493 = vset.pattern.permute.xlu0 5
    %494 = vperm.xlu0 %493, %v42
    %v495 = vpop.permute.xlu0 %494
    %v497 = vadd.f32 %v491, %v495
    %498 = vst [vmem:[#allocation2] sm:$0x1] %v497
    // Predicated region
    $region18: #{tpu_custom_call.1} parent=1 // pred_check
      _
    $region19: #{tpu_custom_call.1} parent=1 // pred_check_branch
      %500 = sbr.rel (0) target = $region21
    $region20: #{tpu_custom_call.1} parent=1 // pred_region
      %502 = vsyncadd [#allocation3], 0
      %s504 = sshll.u32 [#allocation2], 4
      %s505 = int_to_ptr.vmem [resolvable:$true] %s504
      %s506 = sshll.u32 %s4, 4
      %s507 = int_to_ptr.hbm [resolvable:$true] %s506
      %509 = dma.vmem_to_hbm [thread:$0]  %s505, 16, %s507, [#allocation3]
    $region21: #{tpu_custom_call.1} parent=1 // pred_fallthru
      _
    // Predicated region
    $region22: #{tpu_custom_call.1} parent=1 // pred_check
      _
    $region23: #{tpu_custom_call.1} parent=1 // pred_check_branch
      %511 = sbr.rel (0) target = $region25
    $region24: #{tpu_custom_call.1} parent=1 // pred_region
      %513 = dma.done [#allocation3], 16
    $region25: #{tpu_custom_call.1} parent=1 // pred_fallthru
      _
    %514 = vsyncpa [#allocation3], 1

</llo_original>
